<compile_context>
chip_gen: v7x
topology: tpu7x:2x2x1
jax: 0.10.0
libtpu: 0.0.40
codegen_flags: <defaults>
</compile_context>

<pallas_src>
import math
from functools import partial

import jax
import jax.numpy as jnp
from jax import lax
from jax.experimental import pallas as pl
from jax.experimental.pallas import tpu as pltpu

# q @ k^T without materializing a transpose of k
_TRANS_B_DIMS = (((1,), (1,)), ((), ()))


# ----------------------------------------------------------------------------
# Helpers
# ----------------------------------------------------------------------------
def _vmem_limit(working_set_bytes):
    """Generation-aware VMEM limit: >= working set (w/ headroom), >= 32 MiB,
    capped at ~85% of the chip's physical VMEM (128 MiB v5e/v6e, 64 MiB v7x)."""
    cap = 64 << 20
    try:
        info = pltpu.get_tpu_info()
        phys = getattr(info, "vmem_capacity_bytes", None)
        if phys:
            cap = int(0.85 * phys)
    except Exception:
        pass
    want = max(int(working_set_bytes * 1.25) + (2 << 20), 32 << 20)
    return int(min(want, cap))


def _tile_for(length, tile):
    """Pick a sequence tile and padded length satisfying the (8,128) rule."""
    if length <= tile:
        return length, length              # single full-extent block
    t = max(8, (tile // 8) * 8)            # multiple of 8 sublanes
    return t, ((length + t - 1) // t) * t


# ----------------------------------------------------------------------------
# Stage 1 kernel: linear projection  y = x @ W^T + b   (W pre-transposed).
# Runs once per tensor — K/V projection is NOT redone per T-tile anymore.
# ----------------------------------------------------------------------------
def _proj_kernel(x_ref, wt_ref, b_ref, o_ref):
    y = jnp.dot(x_ref[0], wt_ref[...],
                preferred_element_type=jnp.float32) + b_ref[...]
    o_ref[0] = y.astype(o_ref.dtype)


def _project(x_b, w_t, bias, *, tile, compute_dtype):
    """(B, L, E_in) @ (E_in, E_out) + (1, E_out) -> (B, L, E_out) in bf16."""
    B, L, E_in = x_b.shape
    E_out = w_t.shape[1]
    t, L_pad = _tile_for(L, tile)
    x = x_b.astype(compute_dtype)
    if L_pad != L:
        x = jnp.pad(x, ((0, 0), (0, L_pad - L), (0, 0)))

    cb = jnp.dtype(compute_dtype).itemsize
    ws = (2 * t * E_in * cb            # x blocks (double-buffered)
          + 2 * E_in * E_out * cb      # resident weight (2 buffers)
          + 2 * E_out * 4              # bias
          + 2 * t * E_out * cb         # out block
          + t * E_out * 4)             # f32 matmul temporary

    out = pl.pallas_call(
        _proj_kernel,
        out_shape=jax.ShapeDtypeStruct((B, L_pad, E_out), compute_dtype),
        grid_spec=pltpu.PrefetchScalarGridSpec(
            num_scalar_prefetch=0,
            grid=(B, L_pad // t),
            in_specs=[pl.BlockSpec((1, t, E_in), lambda b, l: (b, l, 0)),
                      pl.BlockSpec((E_in, E_out), lambda b, l: (0, 0)),
                      pl.BlockSpec((1, E_out), lambda b, l: (0, 0))],
            out_specs=pl.BlockSpec((1, t, E_out), lambda b, l: (b, l, 0))),
        compiler_params=pltpu.CompilerParams(
            dimension_semantics=("parallel", "parallel"),
            vmem_limit_bytes=_vmem_limit(ws)),
    )(x, w_t, bias)
    return out if L_pad == L else out[:, :L]


# ----------------------------------------------------------------------------
# Stage 3 kernel: per-head attention + fused output projection.
# grid = (B, T-tiles, H); H is the innermost "arbitrary" (accumulation) axis.
#   refs = q(1,1,tq,hd), k(1,1,S,hd), v(1,1,S,hd), WoT_h(hd,E), bo(1,E),
#          out(1,tq,E) [, w(1,tq,S)], acc_scratch(tq,E) f32
# ----------------------------------------------------------------------------
def _attn_kernel(num_heads, need_weights,
                 q_ref, k_ref, v_ref, wot_ref, bo_ref, out_ref, *rest):
    if need_weights:
        w_ref, acc_ref = rest
    else:
        (acc_ref,) = rest
        w_ref = None

    h = pl.program_id(2)
    cdt = q_ref.dtype                       # bf16 MXU operand dtype

    qh = q_ref[0, 0]                        # (tq, hd)  (scaling folded into Wq)
    kh = k_ref[0, 0]                        # (S,  hd)
    vh = v_ref[0, 0]                        # (S,  hd)

    # scores: q_h @ k_h^T via dot_general (no explicit transpose), f32 acc
    s = lax.dot_general(qh, kh, _TRANS_B_DIMS,
                        preferred_element_type=jnp.float32)        # (tq, S)
    s = s - jnp.max(s, axis=-1, keepdims=True)
    e = jnp.exp(s)
    denom = jnp.sum(e, axis=-1, keepdims=True)
    # Exact reciprocal when weights are returned (rows must sum to 1);
    # EUP approx reciprocal on the fast (no-weights) path.
    inv = pl.reciprocal(denom, approx=not need_weights)
    p = e * inv                                                     # (tq, S) f32

    ctx = jnp.dot(p.astype(cdt), vh,
                  preferred_element_type=jnp.float32)               # (tq, hd)

    # Fused output projection: this head's (hd, E) slice of Wo^T, f32 accumulate.
    proj = jnp.dot(ctx.astype(cdt), wot_ref[...],
                   preferred_element_type=jnp.float32)              # (tq, E)

    if need_weights:
        pw = p * (1.0 / num_heads)

    @pl.when(h == 0)
    def _init():
        acc_ref[...] = proj + bo_ref[...]
        if need_weights:
            w_ref[0] = pw.astype(w_ref.dtype)

    @pl.when(h > 0)
    def _accum():
        acc_ref[...] += proj
        if need_weights:
            w_ref[0] = (w_ref[0].astype(jnp.float32) + pw).astype(w_ref.dtype)

    @pl.when(h == num_heads - 1)
    def _finalize():
        out_ref[0] = acc_ref[...].astype(out_ref.dtype)


# ----------------------------------------------------------------------------
# One-time parameter prep: pre-transpose weights, fold scaling, cast to bf16.
# Call ONCE at init (not per forward).
# ----------------------------------------------------------------------------
def prepare_params(params, num_heads, compute_dtype=jnp.bfloat16):
    E = params["wq"].shape[0]
    head_dim = E // num_heads
    scaling = head_dim ** (-0.5)
    return {
        "wq_t": (params["wq"] * scaling).T.astype(compute_dtype),
        "wk_t": params["wk"].T.astype(compute_dtype),
        "wv_t": params["wv"].T.astype(compute_dtype),
        "wo_t": params["wo"].T.astype(compute_dtype),
        "bq": (params["bq"] * scaling).reshape(1, E).astype(jnp.float32),
        "bk": params["bk"].reshape(1, E).astype(jnp.float32),
        "bv": params["bv"].reshape(1, E).astype(jnp.float32),
        "bo": params["bo"].reshape(1, E).astype(jnp.float32),
    }


# ----------------------------------------------------------------------------
# Batch-major core: q/k/v are (B, T, E) / (B, S, E).  Preferred entry point.
# ----------------------------------------------------------------------------
def multihead_attention_batch_major(q_b, k_b, v_b, prep, num_heads, *,
                                    need_weights=False,
                                    compute_dtype=jnp.bfloat16,
                                    out_dtype=jnp.float32,
                                    weights_dtype=jnp.float32,
                                    q_tile=256):
    B, T, E = q_b.shape
    S = k_b.shape[1]
    hd = E // num_heads
    assert hd * num_heads == E
    assert hd % 8 == 0 or hd == E, "head_dim must be a multiple of 8"

    # --- Stage 1: Q/K/V projections (Pallas), once per tensor ---------------
    qp = _project(q_b, prep["wq_t"], prep["bq"], tile=q_tile, compute_dtype=compute_dtype)
    kp = _project(k_b, prep["wk_t"], prep["bk"], tile=q_tile, compute_dtype=compute_dtype)
    vp = _project(v_b, prep["wv_t"], prep["bv"], tile=q_tile, compute_dtype=compute_dtype)

    # --- Stage 2: per-head layout built in the XLA wrapper -------------------
    # (sidesteps the in-kernel (T,E)->(H,T,hd) relayout limitation)
    qh = qp.reshape(B, T, num_heads, hd).transpose(0, 2, 1, 3)   # (B,H,T,hd)
    kh = kp.reshape(B, S, num_heads, hd).transpose(0, 2, 1, 3)   # (B,H,S,hd)
    vh = vp.reshape(B, S, num_heads, hd).transpose(0, 2, 1, 3)   # (B,H,S,hd)

    tq, T_pad = _tile_for(T, q_tile)
    if T_pad != T:                       # proper tail handling: pad, then slice
        qh = jnp.pad(qh, ((0, 0), (0, 0), (0, T_pad - T), (0, 0)))
    n_t = T_pad // tq

    # --- Stage 3: attention + fused output projection ------------------------
    grid = (B, n_t, num_heads)           # B*n_t parallel steps for 2-TC v7x

    q_spec = pl.BlockSpec((1, 1, tq, hd), lambda b, t, h: (b, h, t, 0))
    kv_spec = pl.BlockSpec((1, 1, S, hd), lambda b, t, h: (b, h, 0, 0))
    wo_spec = pl.BlockSpec((hd, E), lambda b, t, h: (h, 0))
    bo_spec = pl.BlockSpec((1, E), lambda b, t, h: (0, 0))
    out_spec = pl.BlockSpec((1, tq, E), lambda b, t, h: (b, t, 0))
    in_specs = [q_spec, kv_spec, kv_spec, wo_spec, bo_spec]

    if need_weights:
        out_shape = (jax.ShapeDtypeStruct((B, T_pad, E), out_dtype),
                     jax.ShapeDtypeStruct((B, T_pad, S), weights_dtype))
        out_specs = (out_spec, pl.BlockSpec((1, tq, S), lambda b, t, h: (b, t, 0)))
    else:
        out_shape = jax.ShapeDtypeStruct((B, T_pad, E), out_dtype)
        out_specs = out_spec

    cb = jnp.dtype(compute_dtype).itemsize
    ob = jnp.dtype(out_dtype).itemsize
    wb = jnp.dtype(weights_dtype).itemsize
    ws = (2 * tq * hd * cb               # q blocks (double-buffered)
          + 2 * 2 * S * hd * cb          # k, v blocks (per-head: S*hd, not S*E)
          + 2 * hd * E * cb              # per-head Wo^T slice
          + 2 * E * 4                    # bo
          + 2 * tq * E * ob              # out block
          + (2 * tq * S * wb if need_weights else 0)
          + tq * E * 4                   # f32 accumulator scratch
          + 4 * tq * S * 4               # in-body f32 score/exp/prob temporaries
          + 2 * tq * E * 4)              # matmul result / headroom

    kernel = partial(_attn_kernel, num_heads, need_weights)
    res = pl.pallas_call(
        kernel,
        out_shape=out_shape,
        grid_spec=pltpu.PrefetchScalarGridSpec(
            num_scalar_prefetch=0,
            grid=grid,
            in_specs=in_specs,
            out_specs=out_specs,
            scratch_shapes=[pltpu.VMEM((tq, E), jnp.float32)]),
        compiler_params=pltpu.CompilerParams(
            dimension_semantics=("parallel", "parallel", "arbitrary"),
            vmem_limit_bytes=_vmem_limit(ws)),
    )(qh, kh, vh, prep["wo_t"], prep["bo"])

    if need_weights:
        out, weights = res
    else:
        out, weights = res, None
    if T_pad != T:
        out = out[:, :T]
        if weights is not None:
            weights = weights[:, :T]
    return out, weights


# ----------------------------------------------------------------------------
# PyTorch-layout wrapper: (T, B, E) in / (T, B, E) out, like nn.MultiheadAttention.
# Takes PREPARED params (prepare_params called once at init).  The two
# transposes are layout plumbing; call the batch-major entry point to avoid them.
# ----------------------------------------------------------------------------
def multihead_attention(query, key, value, prep, num_heads, *,
                        need_weights=True,
                        compute_dtype=jnp.bfloat16,
                        out_dtype=jnp.float32,
                        weights_dtype=jnp.float32,
                        q_tile=256):
    q_b = jnp.transpose(query, (1, 0, 2))
    k_b = jnp.transpose(key, (1, 0, 2))
    v_b = jnp.transpose(value, (1, 0, 2))
    out, weights = multihead_attention_batch_major(
        q_b, k_b, v_b, prep, num_heads,
        need_weights=need_weights, compute_dtype=compute_dtype,
        out_dtype=out_dtype, weights_dtype=weights_dtype, q_tile=q_tile)
    return jnp.transpose(out, (1, 0, 2)), weights
    # TODO(synk): key_padding_mask / attn_mask / dropout / bias_k,bias_v /
    # add_zero_attn / before_softmax / need_head_weights paths not implemented
    # (all default-off in this config).


# ----------------------------------------------------------------------------
# Deterministic parameter init (mirrors reset_parameters).
# ----------------------------------------------------------------------------
def init_params(key, embed_dim):
    def xavier_uniform(k, shape, gain=1.0):
        fan_in, fan_out = shape[1], shape[0]
        a = gain * math.sqrt(6.0 / (fan_in + fan_out))
        return jax.random.uniform(k, shape, jnp.float32, -a, a)

    ks = jax.random.split(key, 8)
    g = 1.0 / math.sqrt(2.0)
    bound = 1.0 / math.sqrt(embed_dim)
    return {
        "wq": xavier_uniform(ks[0], (embed_dim, embed_dim), g),
        "wk": xavier_uniform(ks[1], (embed_dim, embed_dim), g),
        "wv": xavier_uniform(ks[2], (embed_dim, embed_dim), g),
        "wo": xavier_uniform(ks[3], (embed_dim, embed_dim), 1.0),
        "bq": jax.random.uniform(ks[4], (embed_dim,), jnp.float32, -bound, bound),
        "bk": jax.random.uniform(ks[5], (embed_dim,), jnp.float32, -bound, bound),
        "bv": jax.random.uniform(ks[6], (embed_dim,), jnp.float32, -bound, bound),
        "bo": jnp.zeros((embed_dim,), jnp.float32),
    }


# Pure-JAX f32 reference (same math as F.multi_head_attention_forward here).
def reference(query, key, value, params, num_heads):
    T, B, E = query.shape
    S = key.shape[0]
    hd = E // num_heads
    q = query @ params["wq"].T + params["bq"]
    k = key @ params["wk"].T + params["bk"]
    v = value @ params["wv"].T + params["bv"]
    q = q * (hd ** -0.5)
    qh = q.reshape(T, B, num_heads, hd)
    kh = k.reshape(S, B, num_heads, hd)
    vh = v.reshape(S, B, num_heads, hd)
    scores = jnp.einsum("tbhd,sbhd->bhts", qh, kh)
    p = jax.nn.softmax(scores, axis=-1)
    ctx = jnp.einsum("bhts,sbhd->tbhd", p, vh).reshape(T, B, E)
    out = ctx @ params["wo"].T + params["bo"]
    weights = p.mean(axis=1)   # (B, T, S)
    return out, weights


if __name__ == "__main__":
    embed_dim = 32
    num_heads = 4
    T = 8      # tgt_len
    S = 8      # src_len
    B = 2

    key0 = jax.random.PRNGKey(0)
    kq, kk, kv, kp = jax.random.split(key0, 4)
    query = jax.random.normal(kq, (T, B, embed_dim), jnp.float32)
    keyt = jax.random.normal(kk, (S, B, embed_dim), jnp.float32)
    value = jax.random.normal(kv, (S, B, embed_dim), jnp.float32)
    params = init_params(kp, embed_dim)
    prep = prepare_params(params, num_heads)        # prepared ONCE (per review)

    # need_weights=True path (f32 head-averaged weights, exact softmax recip)
    attn_out, attn_weights = multihead_attention(query, keyt, value, prep, num_heads,
                                                 need_weights=True)
    jax.block_until_ready((attn_out, attn_weights))

    # need_weights=False fast path (no (B,T,S) writeback, approx EUP recip)
    attn_out_nw, none_w = multihead_attention(query, keyt, value, prep, num_heads,
                                              need_weights=False)
    jax.block_until_ready(attn_out_nw)

    ref_out, ref_w = reference(query, keyt, value, params, num_heads)

    assert attn_out.shape == (T, B, embed_dim)
    assert attn_weights.shape == (B, T, S)
    assert attn_weights.dtype == jnp.float32
    assert none_w is None
    # bf16 MXU operands => looser tolerance than pure-f32.
    assert jnp.allclose(attn_out, ref_out, atol=3e-2, rtol=3e-2)
    assert jnp.allclose(attn_out_nw, ref_out, atol=3e-2, rtol=3e-2)
    assert jnp.allclose(attn_weights, ref_w, atol=1e-2, rtol=1e-2)
    # exact reciprocal on the weights path => rows sum to ~1
    assert jnp.allclose(attn_weights.sum(-1), 1.0, atol=1e-2)

    print("KERNEL_OK")
</pallas_src>

<mosaic_0001>
module attributes {stable_mosaic.version = 11 : i64} {
  func.func @_proj_kernel(%arg0: i32, %arg1: i32, %arg2: memref<1x8x32xbf16, #tpu.memory_space<vmem>>, %arg3: memref<32x32xbf16, #tpu.memory_space<vmem>>, %arg4: memref<1x32xf32, #tpu.memory_space<vmem>>, %arg5: memref<1x8x32xbf16, #tpu.memory_space<vmem>>) attributes {dimension_semantics = [#tpu.dimension_semantics<parallel>, #tpu.dimension_semantics<parallel>], iteration_bounds = array<i64: 2, 1>, scalar_prefetch = 0 : i64, scratch_operands = 0 : i64, tpu.core_type = #tpu.core_type<tc>, window_params = [{transform_indices = @transform_0, window_bounds = array<i64: 1, 8, 32>}, {pipeline_mode = #tpu.pipeline_mode<synchronous>, transform_indices = @transform_1, window_bounds = array<i64: 32, 32>}, {pipeline_mode = #tpu.pipeline_mode<synchronous>, transform_indices = @transform_2, window_bounds = array<i64: 1, 32>}, {transform_indices = @transform_3, window_bounds = array<i64: 1, 8, 32>}]} {
    %c0 = arith.constant 0 : index
    %c0_0 = arith.constant 0 : index
    %c0_1 = arith.constant 0 : index
    %0 = vector.load %arg2[%c0, %c0_0, %c0_1] : memref<1x8x32xbf16, #tpu.memory_space<vmem>>, vector<1x8x32xbf16>
    %1 = vector.shape_cast %0 : vector<1x8x32xbf16> to vector<8x32xbf16>
    %c0_2 = arith.constant 0 : index
    %c0_3 = arith.constant 0 : index
    %2 = vector.load %arg3[%c0_2, %c0_3] : memref<32x32xbf16, #tpu.memory_space<vmem>>, vector<32x32xbf16>
    %cst = arith.constant dense<0.000000e+00> : vector<8x32xf32>
    %3 = tpu.matmul %1, %2, %cst {dimension_numbers = #tpu.dot_dimension_numbers<[1], [0], [0], [1], [0, 0, 1, 1], [], []>} : vector<8x32xbf16>, vector<32x32xbf16>, vector<8x32xf32> -> vector<8x32xf32>
    %c0_4 = arith.constant 0 : index
    %c0_5 = arith.constant 0 : index
    %4 = vector.load %arg4[%c0_4, %c0_5] : memref<1x32xf32, #tpu.memory_space<vmem>>, vector<1x32xf32>
    %5 = vector.broadcast %4 : vector<1x32xf32> to vector<8x32xf32>
    %6 = arith.addf %3, %5 : vector<8x32xf32>
    %7 = arith.truncf %6 : vector<8x32xf32> to vector<8x32xbf16>
    %c0_6 = arith.constant 0 : index
    %c0_7 = arith.constant 0 : index
    %c0_8 = arith.constant 0 : index
    %8 = vector.load %arg5[%c0_6, %c0_7, %c0_8] : memref<1x8x32xbf16, #tpu.memory_space<vmem>>, vector<1x8x32xbf16>
    %9 = vector.shape_cast %8 : vector<1x8x32xbf16> to vector<8x32xbf16>
    %10 = vector.shape_cast %7 : vector<8x32xbf16> to vector<1x8x32xbf16>
    tpu.vector_store %arg5[%c0_6, %c0_7, %c0_8], %10 {strides = array<i32>} : memref<1x8x32xbf16, #tpu.memory_space<vmem>>, vector<1x8x32xbf16>,
    return
  }
  func.func @transform_0(%arg0: i32, %arg1: i32) -> (i32, i32, i32) {
    %c0_i32 = arith.constant 0 : i32
    %c0_i32_0 = arith.constant 0 : i32
    return %arg0, %arg1, %c0_i32 : i32, i32, i32
  }
  func.func @transform_1(%arg0: i32, %arg1: i32) -> (i32, i32) {
    %c0_i32 = arith.constant 0 : i32
    %c0_i32_0 = arith.constant 0 : i32
    %c0_i32_1 = arith.constant 0 : i32
    return %c0_i32, %c0_i32_0 : i32, i32
  }
  func.func @transform_2(%arg0: i32, %arg1: i32) -> (i32, i32) {
    %c0_i32 = arith.constant 0 : i32
    %c0_i32_0 = arith.constant 0 : i32
    %c0_i32_1 = arith.constant 0 : i32
    return %c0_i32, %c0_i32_0 : i32, i32
  }
  func.func @transform_3(%arg0: i32, %arg1: i32) -> (i32, i32, i32) {
    %c0_i32 = arith.constant 0 : i32
    %c0_i32_0 = arith.constant 0 : i32
    return %arg0, %arg1, %c0_i32 : i32, i32, i32
  }
}

</mosaic_0001>

<llo_original>
// kernel: tpu_custom_call.1
$region0: #{tpu_custom_call.1}
  #allocation0 [shape = 'u32[]', space=smem, size = 0x4, offset = 0x4, fixed_abs, tag = 'smem constant byte address 0x4 - core index']
  #allocation1 [shape = 'u32[144,128]{1,0:T(1,128)}', space=vmem, size = 0x12000, scoped, tag = 'internal scratch']
  %s0 = inlined_call_operand.hbm [shape: bf16[2,8,32], index: 0, kind: input, shape index: {}]
  %s1 = inlined_call_operand.hbm [shape: bf16[32,32], index: 1, kind: input, shape index: {}]
  %s2 = inlined_call_operand.vmem [shape: f32[1,32], index: 2, kind: input, shape index: {}]
  %s3 = inlined_call_operand.hbm [shape: bf16[2,8,32], index: 3, kind: output, shape index: {}]
  %s4 = sld [smem:[#allocation0]]
  $region53: #{tpu_custom_call.1} parent=0
    _
  %s6 = ssub.s32 1, %s4
  %s7 = scalar_select 0, %s6, %s4
  $region1: #{tpu_custom_call.1} parent=0
    #allocation2 [shape = 'u8[4096]{0}', space=vmem, size = 0x1000, scoped, tag = 'input window, operand 0']
    #allocation3 [shape = 's32[2]{0}', space=sflag, size = 0x8, scoped, tag = 'scoped memory for tpu_custom_call.1']
    #allocation4 [shape = 's32[2]{0}', space=sflag, size = 0x8, scoped, tag = 'scoped memory for tpu_custom_call.1']
    #allocation5 [shape = 'u8[8192]{0}', space=vmem, size = 0x2000, scoped, tag = 'input window, operand 1, single buffered']
    #allocation6 [shape = 's32[1]{0}', space=sflag, size = 0x4, scoped, tag = 'scoped memory for tpu_custom_call.1']
    #allocation7 [shape = 'u8[4096]{0}', space=vmem, size = 0x1000, scoped, tag = 'output window, operand 0']
    %8 = vsyncpa [#allocation3], 0
    %s9 = scalar_lea.sflag [#allocation3], 1
    %10 = vsyncpa %s9, 0
    %11 = vsyncpa [#allocation6], 0
    %12 = vsyncpa [#allocation4], 0
    %s13 = scalar_lea.sflag [#allocation4], 1
    %14 = vsyncpa %s13, 0
    loop: start=0, step=1, limit=4
    $region2: #{tpu_custom_call.1} parent=1 // loop_pre_header
      _
    $region3: #{tpu_custom_call.1} parent=1 // loop_header
      %s16 = sphi 0, %s20
      %p17 = scmp.ge.s32.totalorder %s16, 4
      %s23 = sphi 0, %s35
      %s24 = sphi 0, %s31
      %s25 = sphi 0, %s23
      %s26 = sphi 0, %s24
      %s27 = sphi 0, %s25
      %s28 = sphi 0, %s26
      %s40 = sphi 0, %s42
      %s43 = sphi 0, %s40
      %s44 = sphi 0, %s43
      %s60 = sphi 0, %s44
      %s64 = sphi 0, %s64
      %s66 = sphi 0, %s64
      %s67 = sphi 0, %s66
      %s81 = sphi 0, %s67
      %s85 = sphi 0, %s85
      %s87 = sphi 0, %s85
      %s88 = sphi 0, %s87
      %s102 = sphi 0, %s88
      %s110 = sphi 0, %s112
      %s113 = sphi 0, %s110
      %s114 = sphi 0, %s113
      %s130 = sphi 0, %s114
    $region4: #{tpu_custom_call.1} parent=1 // loop_header_branch
      %19 = sbr.rel (%p17) target = $region8
    $region5: #{tpu_custom_call.1} parent=1 // loop_body
      %s21 = ssub.s32 %s16, 1
      %s22 = ssub.s32 %s16, 2
      %s29 = sadd.s32 1, %s24
      %p30 = scmp.ge.s32.totalorder %s29, 1
      %s31 = scalar_select %p30, 0, %s29
      %s32 = sadd.s32 1, %s23
      %s33 = scalar_select %p30, %s32, %s23
      %p34 = scmp.ge.s32.totalorder %s33, 2
      %s35 = scalar_select %p34, 0, %s33
      %s36 = ssub.s32 %s23, %s35
      %s37 = ssub.s32 %s24, %s31
      %s38 = sor.u32 %s36, %s37
      %p39 = scmp.eq.s32.totalorder %s38, 0
      %s41 = sadd.s32 %s40, 1
      %s42 = scalar_select %p39, %s40, %s41
      %p45 = pneg %p39
      %p46 = scmp.eq.s32.totalorder %s16, 1
      %p47 = por %p45, %p46
      %p48 = scmp.ne.s32.totalorder %s40, %s43
      %p49 = scmp.eq.s32.totalorder %s16, 0
      %p50 = por %p48, %p49
      %p51 = scmp.ne.s32.totalorder %s40, %s43
      %p52 = scmp.eq.s32.totalorder %s21, 1
      %p53 = por %p51, %p52
      %p54 = scmp.ne.s32.totalorder %s43, %s44
      %p55 = scmp.eq.s32.totalorder %s21, 0
      %p56 = por %p54, %p55
      %p57 = scmp.ne.s32.totalorder %s43, %s44
      %p58 = scmp.eq.s32.totalorder %s22, 1
      %p59 = por %p57, %p58
      %p61 = scmp.ne.s32.totalorder %s44, %s60
      %p62 = scmp.eq.s32.totalorder %s22, 0
      %p63 = por %p61, %p62
      %s65 = sadd.s32 %s64, 1
      %p68 = scmp.eq.s32.totalorder %s16, 1
      %p69 = scmp.ne.s32.totalorder %s64, %s66
      %p70 = scmp.eq.s32.totalorder %s16, 0
      %p71 = por %p69, %p70
      %p72 = scmp.ne.s32.totalorder %s64, %s66
      %p73 = scmp.eq.s32.totalorder %s21, 1
      %p74 = por %p72, %p73
      %p75 = scmp.ne.s32.totalorder %s66, %s67
      %p76 = scmp.eq.s32.totalorder %s21, 0
      %p77 = por %p75, %p76
      %p78 = scmp.ne.s32.totalorder %s66, %s67
      %p79 = scmp.eq.s32.totalorder %s22, 1
      %p80 = por %p78, %p79
      %p82 = scmp.ne.s32.totalorder %s67, %s81
      %p83 = scmp.eq.s32.totalorder %s22, 0
      %p84 = por %p82, %p83
      %s86 = sadd.s32 %s85, 1
      %p89 = scmp.eq.s32.totalorder %s16, 1
      %p90 = scmp.ne.s32.totalorder %s85, %s87
      %p91 = scmp.eq.s32.totalorder %s16, 0
      %p92 = por %p90, %p91
      %p93 = scmp.ne.s32.totalorder %s85, %s87
      %p94 = scmp.eq.s32.totalorder %s21, 1
      %p95 = por %p93, %p94
      %p96 = scmp.ne.s32.totalorder %s87, %s88
      %p97 = scmp.eq.s32.totalorder %s21, 0
      %p98 = por %p96, %p97
      %p99 = scmp.ne.s32.totalorder %s87, %s88
      %p100 = scmp.eq.s32.totalorder %s22, 1
      %p101 = por %p99, %p100
      %p103 = scmp.ne.s32.totalorder %s88, %s102
      %p104 = scmp.eq.s32.totalorder %s22, 0
      %p105 = por %p103, %p104
      %s106 = ssub.s32 %s23, %s35
      %s107 = ssub.s32 %s24, %s31
      %s108 = sor.u32 %s106, %s107
      %p109 = scmp.eq.s32.totalorder %s108, 0
      %s111 = sadd.s32 %s110, 1
      %s112 = scalar_select %p109, %s110, %s111
      %p115 = pneg %p109
      %p116 = scmp.eq.s32.totalorder %s16, 1
      %p117 = por %p115, %p116
      %p118 = scmp.ne.s32.totalorder %s110, %s113
      %p119 = scmp.eq.s32.totalorder %s16, 0
      %p120 = por %p118, %p119
      %p121 = scmp.ne.s32.totalorder %s110, %s113
      %p122 = scmp.eq.s32.totalorder %s21, 1
      %p123 = por %p121, %p122
      %p124 = scmp.ne.s32.totalorder %s113, %s114
      %p125 = scmp.eq.s32.totalorder %s21, 0
      %p126 = por %p124, %p125
      %p127 = scmp.ne.s32.totalorder %s113, %s114
      %p128 = scmp.eq.s32.totalorder %s22, 1
      %p129 = por %p127, %p128
      %p131 = scmp.ne.s32.totalorder %s114, %s130
      %p132 = scmp.eq.s32.totalorder %s22, 0
      %p133 = por %p131, %p132
      %p134 = scmp.le.s32.totalorder 1, %s16
      %p135 = scmp.lt.s32.totalorder %s16, 3
      %p136 = pnand %p134, %p135
      %p137 = pneg %p136
      // Predicated region
      $region9: #{tpu_custom_call.1} parent=5 // pred_check
        _
      $region10: #{tpu_custom_call.1} parent=5 // pred_check_branch
        %139 = sbr.rel (%p136) target = $region12
      $region11: #{tpu_custom_call.1} parent=5 // pred_region
        %s140 = ssub.s32 %s16, 1
        // Predicated region
        $region13: #{tpu_custom_call.1} parent=11 // pred_check
          %p141 = pneg %p77
        $region14: #{tpu_custom_call.1} parent=11 // pred_check_branch
          %143 = sbr.rel (%p141) target = $region16
        $region15: #{tpu_custom_call.1} parent=11 // pred_region
          %s145 = ssub.s32 256, 256
          %146 = vsyncadd [#allocation6], %s145
          %s147 = sshll.u32 [#allocation5], 4
          %s148 = int_to_ptr.vmem [resolvable:$true] %s147
          %153 = dma.hbm_to_vmem [thread:$0]  %s1, 256, %s148, [#allocation6], 64, 64, 4
        $region16: #{tpu_custom_call.1} parent=11 // pred_fallthru
          _
        // Predicated region
        $region17: #{tpu_custom_call.1} parent=11 // pred_check
          %p154 = pneg %p98
        $region18: #{tpu_custom_call.1} parent=11 // pred_check_branch
          %156 = sbr.rel (%p154) target = $region20
        $region19: #{tpu_custom_call.1} parent=11 // pred_region
          _
        $region20: #{tpu_custom_call.1} parent=11 // pred_fallthru
          _
      $region12: #{tpu_custom_call.1} parent=5 // pred_fallthru
        _
      %p157 = scmp.lt.s32.totalorder %s16, 2
      // Predicated region
      $region21: #{tpu_custom_call.1} parent=5 // pred_check
        %p158 = pneg %p157
      $region22: #{tpu_custom_call.1} parent=5 // pred_check_branch
        %160 = sbr.rel (%p158) target = $region24
      $region23: #{tpu_custom_call.1} parent=5 // pred_region
        // Predicated region
        $region25: #{tpu_custom_call.1} parent=23 // pred_check
          %p161 = pneg %p50
        $region26: #{tpu_custom_call.1} parent=23 // pred_check_branch
          %163 = sbr.rel (%p161) target = $region28
        $region27: #{tpu_custom_call.1} parent=23 // pred_region
          %s164 = sand.u32 %s40, 1
          %s165 = scalar_lea.sflag [#allocation3], %s164
          %s166 = sand.u32 %s40, 1
          %s167 = smul.addr %s166, 4
          %s168 = scalar_lea.vmem [#allocation2], %s167
          %s170 = ssub.s32 64, 64
          %171 = vsyncadd %s165, %s170
          %s172 = sadd.s32 %s24, %s23
          %s173 = smul.addr %s172, 64
          %s174 = scalar_lea.hbm %s0, %s173
          %s176 = sshll.u32 %s168, 4
          %s177 = int_to_ptr.vmem [resolvable:$true] %s176
          %179 = dma.hbm_to_vmem [thread:$0]  %s174, 64, %s177, %s165
        $region28: #{tpu_custom_call.1} parent=23 // pred_fallthru
          _
      $region24: #{tpu_custom_call.1} parent=5 // pred_fallthru
        _
      %p180 = scmp.le.s32.totalorder 1, %s16
      %p181 = scmp.lt.s32.totalorder %s16, 3
      %p182 = pnand %p180, %p181
      %p183 = pneg %p182
      // Predicated region
      $region29: #{tpu_custom_call.1} parent=5 // pred_check
        _
      $region30: #{tpu_custom_call.1} parent=5 // pred_check_branch
        %185 = sbr.rel (%p182) target = $region32
      $region31: #{tpu_custom_call.1} parent=5 // pred_region
        %s186 = ssub.s32 %s16, 1
        %s187 = sand.u32 %s43, 1
        %s188 = scalar_lea.sflag [#allocation3], %s187
        %s189 = sand.u32 %s43, 1
        %s190 = smul.addr %s189, 4
        %s191 = scalar_lea.vmem [#allocation2], %s190
        // Predicated region
        $region33: #{tpu_custom_call.1} parent=31 // pred_check
          %p192 = pneg %p56
        $region34: #{tpu_custom_call.1} parent=31 // pred_check_branch
          %194 = sbr.rel (%p192) target = $region36
        $region35: #{tpu_custom_call.1} parent=31 // pred_region
          %195 = dma.done %s188, 64
        $region36: #{tpu_custom_call.1} parent=31 // pred_fallthru
          _
        // Predicated region
        $region37: #{tpu_custom_call.1} parent=31 // pred_check
          %p196 = pneg %p77
        $region38: #{tpu_custom_call.1} parent=31 // pred_check_branch
          %198 = sbr.rel (%p196) target = $region40
        $region39: #{tpu_custom_call.1} parent=31 // pred_region
          %199 = dma.done [#allocation6], 256
        $region40: #{tpu_custom_call.1} parent=31 // pred_fallthru
          _
        %s200 = sand.u32 %s43, 1
        %s201 = scalar_lea.sflag [#allocation3], %s200
        %s202 = sand.u32 %s43, 1
        %s203 = smul.addr %s202, 4
        %s204 = scalar_lea.vmem [#allocation2], %s203
        %p205 = pneg %p56
        %p206 = pneg %p53
        %p207 = pneg %p77
        %p208 = pneg %p74
        %p209 = pneg %p98
        %p210 = pneg %p95
        %p211 = pneg %p126
        %p212 = pneg %p123
        %s213 = sand.u32 %s113, 1
        %s214 = scalar_lea.sflag [#allocation4], %s213
        %s215 = sand.u32 %s113, 1
        %s216 = smul.addr %s215, 4
        %s217 = scalar_lea.vmem [#allocation7], %s216
        %v219 = vld [vmem:[%s191] sm:$0xf]
        %v220 = vld [vmem:[#allocation5] sm:$0xf]
        %v221 = vld [vmem:[#allocation5 + $0x4] sm:$0xf]
        %v222 = vld [vmem:[#allocation5 + $0x8] sm:$0xf]
        %v223 = vld [vmem:[#allocation5 + $0xc] sm:$0xf]
        %v224 = vld [vmem:[%s2] sm:$0x1]
        %v226 = vlaneseq
        %v227 = vshrl.u32 %v226, 7
        %v228 = vsub.s32 0, %v227
        %v229 = vrot.slane %v224, %v228
        %v235 = vunpack.c.l.b16 %v220
        %v236 = vunpack.c.l.b16 %v221
        %v237 = vunpack.c.l.b16 %v222
        %v238 = vunpack.c.l.b16 %v223
        %v239 = vpack.c.b16 %v236, %v235
        %v240 = vpack.c.b16 %v238, %v237
        %vm243 = vcmask 261120
        %v245 = vsel %vm243, %v219, 0
        %247 = vmatprep.subr.bf16.mxu0 0
        %248 = vmatpush1.bf16.msra.mxu0 %v239
        %249 = vmatprep.subr.bf16.mxu0 0
        %250 = vmatpush1.bf16.msra.mxu0 %v240
        %251 = vmatprep.subr.bf16.mxu0 0
        %252 = vmatpush1.bf16.msra.mxu0 0
        %253 = vmatprep.subr.bf16.mxu0 0
        %254 = vmatpush1.bf16.msra.mxu0 0
        %255 = vmatprep.subr.bf16.mxu0 0
        %256 = vmatpush1.bf16.msra.mxu0 0
        %257 = vmatprep.subr.bf16.mxu0 0
        %258 = vmatpush1.bf16.msra.mxu0 0
        %259 = vmatprep.subr.bf16.mxu0 0
        %260 = vmatpush1.bf16.msra.mxu0 0
        %261 = vmatprep.subr.bf16.mxu0 0
        %262 = vmatpush1.bf16.msra.mxu0 0
        %263 = vmatprep.subr.bf16.mxu0 0
        %264 = vmatpush1.bf16.msra.mxu0 0
        %265 = vmatprep.subr.bf16.mxu0 0
        %266 = vmatpush1.bf16.msra.mxu0 0
        %267 = vmatprep.subr.bf16.mxu0 0
        %268 = vmatpush1.bf16.msra.mxu0 0
        %269 = vmatprep.subr.bf16.mxu0 0
        %270 = vmatpush1.bf16.msra.mxu0 0
        %271 = vmatprep.subr.bf16.mxu0 0
        %272 = vmatpush1.bf16.msra.mxu0 0
        %273 = vmatprep.subr.bf16.mxu0 0
        %274 = vmatpush1.bf16.msra.mxu0 0
        %275 = vmatprep.subr.bf16.mxu0 0
        %276 = vmatpush1.bf16.msra.mxu0 0
        %277 = vmatprep.subr.bf16.mxu0 0
        %278 = vmatpush1.bf16.msra.mxu0 0
        %279 = vmatprep.mubr.bf16.mxu0 0
        %280 = vmatmul.mubr.bf16.gmra.mrb[0].mxu0 %v245
        %v281 = vpop.f32.mrb[0].mxu0
        %v282 = vadd.f32 %v229, %v281
        %v283 = vpop.f32.mrb[0].mxu0
        %v284 = vpop.f32.mrb[0].mxu0
        %v285 = vpop.f32.mrb[0].mxu0
        %286 = vdwg.mxu0
        %v287 = vpack.c.bf16 %v282, %v282
        %vm288 = vcmask 257024
        %289 = vst.msk [vmem:[%s217] sm:$0xf] %vm288, %v287
        %s290 = sand.u32 %s113, 1
        %s291 = scalar_lea.sflag [#allocation4], %s290
        %s292 = sand.u32 %s113, 1
        %s293 = smul.addr %s292, 4
        %s294 = scalar_lea.vmem [#allocation7], %s293
        // Predicated region
        $region41: #{tpu_custom_call.1} parent=31 // pred_check
          %p295 = pneg %p123
        $region42: #{tpu_custom_call.1} parent=31 // pred_check_branch
          %297 = sbr.rel (%p295) target = $region44
        $region43: #{tpu_custom_call.1} parent=31 // pred_region
          %s299 = ssub.s32 64, 64
          %300 = vsyncadd %s291, %s299
          %s301 = sadd.s32 %s26, %s25
          %s302 = smul.addr %s301, 64
          %s303 = scalar_lea.hbm %s3, %s302
          %s305 = sshll.u32 %s294, 4
          %s306 = int_to_ptr.vmem [resolvable:$true] %s305
          %308 = dma.vmem_to_hbm [thread:$0]  %s306, 64, %s303, %s291
        $region44: #{tpu_custom_call.1} parent=31 // pred_fallthru
          _
      $region32: #{tpu_custom_call.1} parent=5 // pred_fallthru
        _
      %p309 = scmp.le.s32.totalorder 2, %s16
      // Predicated region
      $region45: #{tpu_custom_call.1} parent=5 // pred_check
        %p310 = pneg %p309
      $region46: #{tpu_custom_call.1} parent=5 // pred_check_branch
        %312 = sbr.rel (%p310) target = $region48
      $region47: #{tpu_custom_call.1} parent=5 // pred_region
        %s313 = ssub.s32 %s16, 2
        // Predicated region
        $region49: #{tpu_custom_call.1} parent=47 // pred_check
          %p314 = pneg %p129
        $region50: #{tpu_custom_call.1} parent=47 // pred_check_branch
          %316 = sbr.rel (%p314) target = $region52
        $region51: #{tpu_custom_call.1} parent=47 // pred_region
          %s317 = sand.u32 %s114, 1
          %s318 = scalar_lea.sflag [#allocation4], %s317
          %s319 = sand.u32 %s114, 1
          %s320 = smul.addr %s319, 4
          %s321 = scalar_lea.vmem [#allocation7], %s320
          %322 = dma.done %s318, 64
        $region52: #{tpu_custom_call.1} parent=47 // pred_fallthru
          _
      $region48: #{tpu_custom_call.1} parent=5 // pred_fallthru
        _
    $region6: #{tpu_custom_call.1} parent=1 // loop_footer
      %s20 = sadd.s32 1, %s16
    $region7: #{tpu_custom_call.1} parent=1 // loop_footer_branch
      %15 = sbr.rel target = $region3
    $region8: #{tpu_custom_call.1} parent=1 // loop_exit
      _
    %323 = vsyncpa [#allocation3], 1
    %s324 = scalar_lea.sflag [#allocation3], 1
    %325 = vsyncpa %s324, 1
    %326 = vsyncpa [#allocation6], 1
    %327 = vsyncpa [#allocation4], 1
    %s328 = scalar_lea.sflag [#allocation4], 1
    %329 = vsyncpa %s328, 1

</llo_original>
